<compile_context>
chip_gen: v5e
topology: v5e:2x2
jax: 0.10.0
libtpu: 0.0.40
codegen_flags: <defaults>
</compile_context>

<pallas_src>
import math
from functools import partial

import jax
import jax.numpy as jnp
from jax import lax
from jax.experimental import pallas as pl
from jax.experimental.pallas import tpu as pltpu

# Contract the LAST dim of both operands (i.e. a @ b.T) without a transpose op.
_CONTRACT_LAST_BOTH = (((1,), (1,)), ((), ()))
# Standard a @ b contraction.
_CONTRACT_STD = (((1,), (0,)), ((), ()))


def _mha_kernel(x_ref, wq_ref, wk_ref, wv_ref, wo_ref, o_ref, acc_ref, *, d_model, masking):
    """One (batch element, head) step: project, attend, accumulate into the output projection."""
    T = x_ref.shape[1]
    h = pl.program_id(1)

    # Module scales scores by sqrt(d_model) (not sqrt(head_dim)); fold into q once.
    scale = 1.0 / math.sqrt(d_model)          # Python float -> jaxpr literal, never a const

    x = x_ref[0].astype(jnp.bfloat16)         # (T, D_in) bf16 MXU operand

    # Per-head projections (bias=False): q_h = x @ Wq_h.T etc. bf16 operands, f32 accumulation.
    q = lax.dot_general(x, wq_ref[...], _CONTRACT_LAST_BOTH,
                        preferred_element_type=jnp.float32) * scale        # (T, hd) f32
    k = lax.dot_general(x, wk_ref[...], _CONTRACT_LAST_BOTH,
                        preferred_element_type=jnp.float32)                # (T, hd) f32
    v = lax.dot_general(x, wv_ref[...], _CONTRACT_LAST_BOTH,
                        preferred_element_type=jnp.float32)                # (T, hd) f32

    # scores = q @ k.T (contraction on last dims, no transpose op).
    s = lax.dot_general(q.astype(jnp.bfloat16), k.astype(jnp.bfloat16),
                        _CONTRACT_LAST_BOTH, preferred_element_type=jnp.float32)   # (T, T) f32

    if masking:
        row = lax.broadcasted_iota(jnp.int32, (T, T), 0)
        col = lax.broadcasted_iota(jnp.int32, (T, T), 1)
        # Causal mask: all-tracer select (masked entries ~ -1e30 -> exp underflows to 0).
        # Avoids closed-over scalar constants and inf-inf NaN hazards.
        s = jnp.where(col <= row, s, s - 1e30)

    # Softmax statistics stay in f32 (v5e has no bf16 VPU/EUP).
    m = jnp.max(s, axis=-1, keepdims=True)
    p = jnp.exp(s - m)                                  # unnormalized probs, f32
    l = jnp.sum(p, axis=-1, keepdims=True)              # (T, 1) f32

    # ctx_h = softmax(s) @ v_h with deferred normalization (EUP approx reciprocal ~ free).
    ctx = lax.dot_general(p.astype(jnp.bfloat16), v.astype(jnp.bfloat16),
                          _CONTRACT_STD, preferred_element_type=jnp.float32)       # (T, hd)
    ctx = ctx * pl.reciprocal(l, approx=True)

    # Head h's contribution to final_linear: out += ctx_h @ Wo[:, h*hd:(h+1)*hd].T
    # (K-split of the output projection over heads; accumulated in f32 scratch.)
    contrib = lax.dot_general(ctx.astype(jnp.bfloat16), wo_ref[0],
                              _CONTRACT_LAST_BOTH, preferred_element_type=jnp.float32)  # (T, d_model)

    @pl.when(h == 0)
    def _init():
        acc_ref[...] = contrib

    @pl.when(h != 0)
    def _accum():
        acc_ref[...] += contrib

    @pl.when(h == pl.num_programs(1) - 1)
    def _finalize():
        # Single lane-dense (T, d_model) store — no masked head_dim-wide partial stores.
        o_ref[0] = acc_ref[...].astype(o_ref.dtype)


def _vmem_budget(T, d_in, d_model, head_dim):
    """Explicit, generation-aware VMEM budget -> (vmem_limit_bytes, estimated bytes needed)."""
    f32, bf16 = 4, 2
    # Double-buffered pipeline blocks (default 2-deep buffering per BlockSpec).
    blocks = 2 * (f32 * T * d_in                   # x block
                  + 3 * bf16 * head_dim * d_in     # per-head Wq/Wk/Wv slices
                  + bf16 * d_model * head_dim      # per-head Wo slice
                  + f32 * T * d_model)             # output block
    scratch = f32 * T * d_model                    # f32 accumulator
    live = (3 * f32 * T * head_dim                 # q/k/v
            + (f32 + bf16) * T * T                 # scores (f32) + p (bf16)
            + f32 * T * d_model)                   # per-head contribution
    need = blocks + scratch + live
    try:
        cap = pltpu.get_tpu_info().vmem_capacity_bytes   # 64 MiB on v7x, 128 MiB on v5e/v6e
    except Exception:
        cap = 64 * 1024 * 1024                            # conservative (v7x-sized) fallback
    limit = int(min(max(2 * need, 32 * 1024 * 1024), int(0.9 * cap)))
    return limit, int(need)


def multi_head_attention(x, wq, wk, wv, wo, *, num_heads, masking=True):
    B, T, D_in = x.shape
    d_model = wq.shape[0]
    assert d_model % num_heads == 0, "d_model must be divisible by num_heads"
    head_dim = d_model // num_heads
    assert head_dim % 8 == 0 or head_dim == d_model, (
        "head_dim must be a multiple of 8 (TPU sublane tiling) for per-head weight blocks")

    # bf16 MXU operands (f32 accumulation inside the kernel); halves weight DMA traffic too.
    wq_b = wq.astype(jnp.bfloat16)
    wk_b = wk.astype(jnp.bfloat16)
    wv_b = wv.astype(jnp.bfloat16)
    # final_linear weight regrouped per head so each BlockSpec block is (d_model, head_dim)
    # with full last-two dims: wo_r[h] == Wo[:, h*hd:(h+1)*hd].
    wo_r = wo.reshape(d_model, num_heads, head_dim).transpose(1, 0, 2).astype(jnp.bfloat16)

    vmem_limit, vmem_need = _vmem_budget(T, D_in, d_model, head_dim)
    if vmem_need > vmem_limit:
        # TODO(synk): flash-style KV tiling with online softmax removes the (T,T) tile.
        raise ValueError(
            f"Per-step VMEM footprint {vmem_need/2**20:.1f} MiB exceeds budget "
            f"{vmem_limit/2**20:.1f} MiB; sequence too long for the non-flash kernel.")

    kernel = partial(_mha_kernel, d_model=d_model, masking=masking)

    # Advisory cost estimate so XLA schedules around the custom call.
    flops = int(2 * B * T * (3 * D_in * d_model + 2 * T * d_model + d_model * d_model))
    transcendentals = int(B * num_heads * T * T)
    bytes_accessed = int(4 * x.size + 2 * (wq.size + wk.size + wv.size + wo.size)
                         + 4 * B * T * d_model)
    cost = pl.CostEstimate(flops=flops, transcendentals=transcendentals,
                           bytes_accessed=bytes_accessed)

    return pl.pallas_call(
        kernel,
        out_shape=jax.ShapeDtypeStruct((B, T, d_model), x.dtype),
        grid_spec=pltpu.PrefetchScalarGridSpec(
            num_scalar_prefetch=0,
            grid=(B, num_heads),          # batch outer ("parallel"), heads inner (reduction)
            in_specs=[
                # x stays resident across the inner head axis (block index constant in h).
                pl.BlockSpec((1, T, D_in), lambda b, h: (b, 0, 0)),
                pl.BlockSpec((head_dim, D_in), lambda b, h: (h, 0)),
                pl.BlockSpec((head_dim, D_in), lambda b, h: (h, 0)),
                pl.BlockSpec((head_dim, D_in), lambda b, h: (h, 0)),
                pl.BlockSpec((1, d_model, head_dim), lambda b, h: (h, 0, 0)),
            ],
            # Output block index constant across the head axis -> resident accumulator target.
            out_specs=pl.BlockSpec((1, T, d_model), lambda b, h: (b, 0, 0)),
            scratch_shapes=[pltpu.VMEM((T, d_model), jnp.float32)],
        ),
        compiler_params=pltpu.CompilerParams(
            dimension_semantics=("parallel", "arbitrary"),
            vmem_limit_bytes=vmem_limit,
        ),
        cost_estimate=cost,
    )(x, wq_b, wk_b, wv_b, wo_r)


def _reference(x, wq, wk, wv, wo, *, num_heads, masking=True):
    B, T, D_in = x.shape
    d_model = wq.shape[0]
    hd = d_model // num_heads
    q = x @ wq.T
    k = x @ wk.T
    v = x @ wv.T
    q = q.reshape(B, T, num_heads, hd).transpose(0, 2, 1, 3)
    k = k.reshape(B, T, num_heads, hd).transpose(0, 2, 1, 3)
    v = v.reshape(B, T, num_heads, hd).transpose(0, 2, 1, 3)
    s = jnp.einsum('bhqd,bhkd->bhqk', q, k)
    if masking:
        mask = jnp.triu(jnp.ones((T, T), bool), k=1)
        s = jnp.where(mask, -jnp.inf, s)
    w = jax.nn.softmax(s / math.sqrt(d_model), axis=-1)
    ctx = jnp.einsum('bhqk,bhkd->bhqd', w, v)
    ctx = ctx.transpose(0, 2, 1, 3).reshape(B, T, d_model)
    return ctx @ wo.T


if __name__ == "__main__":
    # Small shapes consistent with the module's forward.
    batch, seq, input_dim = 2, 8, 32
    d_model, num_heads = 32, 4

    key = jax.random.PRNGKey(0)
    kx, kq, kk, kv, ko = jax.random.split(key, 5)

    # Deterministic PyTorch-Linear-style init: U(-1/sqrt(fan_in), 1/sqrt(fan_in))
    bound_in = 1.0 / math.sqrt(input_dim)
    bound_dm = 1.0 / math.sqrt(d_model)
    x = jax.random.normal(kx, (batch, seq, input_dim), jnp.float32)
    wq = jax.random.uniform(kq, (d_model, input_dim), jnp.float32, -bound_in, bound_in)
    wk = jax.random.uniform(kk, (d_model, input_dim), jnp.float32, -bound_in, bound_in)
    wv = jax.random.uniform(kv, (d_model, input_dim), jnp.float32, -bound_in, bound_in)
    wo = jax.random.uniform(ko, (d_model, d_model), jnp.float32, -bound_dm, bound_dm)

    out = multi_head_attention(x, wq, wk, wv, wo, num_heads=num_heads, masking=True)
    out = jax.block_until_ready(out)

    ref = _reference(x, wq, wk, wv, wo, num_heads=num_heads, masking=True)
    assert out.shape == (batch, seq, d_model)
    # bf16 MXU operands (f32 accumulation) -> tolerance looser than pure-f32.
    assert jnp.allclose(out, ref, atol=3e-2, rtol=3e-2), "mismatch vs reference"

    print("KERNEL_OK")
</pallas_src>

<mosaic_0001>
module attributes {stable_mosaic.version = 11 : i64} {
  func.func @_mha_kernel(%arg0: i32, %arg1: i32, %arg2: memref<1x8x32xf32, #tpu.memory_space<vmem>>, %arg3: memref<8x32xbf16, #tpu.memory_space<vmem>>, %arg4: memref<8x32xbf16, #tpu.memory_space<vmem>>, %arg5: memref<8x32xbf16, #tpu.memory_space<vmem>>, %arg6: memref<1x32x8xbf16, #tpu.memory_space<vmem>>, %arg7: memref<1x8x32xf32, #tpu.memory_space<vmem>>, %arg8: memref<8x32xf32, #tpu.memory_space<vmem>>) attributes {dimension_semantics = [#tpu.dimension_semantics<parallel>, #tpu.dimension_semantics<arbitrary>], iteration_bounds = array<i64: 2, 4>, scalar_prefetch = 0 : i64, scratch_operands = 1 : i64, tpu.core_type = #tpu.core_type<tc>, window_params = [{transform_indices = @transform_0, window_bounds = array<i64: 1, 8, 32>}, {transform_indices = @transform_1, window_bounds = array<i64: 8, 32>}, {transform_indices = @transform_2, window_bounds = array<i64: 8, 32>}, {transform_indices = @transform_3, window_bounds = array<i64: 8, 32>}, {transform_indices = @transform_4, window_bounds = array<i64: 1, 32, 8>}, {transform_indices = @transform_5, window_bounds = array<i64: 1, 8, 32>}]} {
    %c0 = arith.constant 0 : index
    %c0_0 = arith.constant 0 : index
    %c0_1 = arith.constant 0 : index
    %0 = vector.load %arg2[%c0, %c0_0, %c0_1] : memref<1x8x32xf32, #tpu.memory_space<vmem>>, vector<1x8x32xf32>
    %1 = vector.shape_cast %0 : vector<1x8x32xf32> to vector<8x32xf32>
    %2 = arith.truncf %1 : vector<8x32xf32> to vector<8x32xbf16>
    %c0_2 = arith.constant 0 : index
    %c0_3 = arith.constant 0 : index
    %3 = vector.load %arg3[%c0_2, %c0_3] : memref<8x32xbf16, #tpu.memory_space<vmem>>, vector<8x32xbf16>
    %cst = arith.constant dense<0.000000e+00> : vector<8x8xf32>
    %4 = tpu.matmul %2, %3, %cst {dimension_numbers = #tpu.dot_dimension_numbers<[1], [1], [0], [0], [0, 0, 1, 0], [], []>} : vector<8x32xbf16>, vector<8x32xbf16>, vector<8x8xf32> -> vector<8x8xf32>
    %cst_4 = arith.constant 0.176776692 : f32
    %5 = vector.broadcast %cst_4 : f32 to vector<8x8xf32>
    %6 = arith.mulf %4, %5 : vector<8x8xf32>
    %c0_5 = arith.constant 0 : index
    %c0_6 = arith.constant 0 : index
    %7 = vector.load %arg4[%c0_5, %c0_6] : memref<8x32xbf16, #tpu.memory_space<vmem>>, vector<8x32xbf16>
    %cst_7 = arith.constant dense<0.000000e+00> : vector<8x8xf32>
    %8 = tpu.matmul %2, %7, %cst_7 {dimension_numbers = #tpu.dot_dimension_numbers<[1], [1], [0], [0], [0, 0, 1, 0], [], []>} : vector<8x32xbf16>, vector<8x32xbf16>, vector<8x8xf32> -> vector<8x8xf32>
    %c0_8 = arith.constant 0 : index
    %c0_9 = arith.constant 0 : index
    %9 = vector.load %arg5[%c0_8, %c0_9] : memref<8x32xbf16, #tpu.memory_space<vmem>>, vector<8x32xbf16>
    %cst_10 = arith.constant dense<0.000000e+00> : vector<8x8xf32>
    %10 = tpu.matmul %2, %9, %cst_10 {dimension_numbers = #tpu.dot_dimension_numbers<[1], [1], [0], [0], [0, 0, 1, 0], [], []>} : vector<8x32xbf16>, vector<8x32xbf16>, vector<8x8xf32> -> vector<8x8xf32>
    %11 = arith.truncf %6 : vector<8x8xf32> to vector<8x8xbf16>
    %12 = arith.truncf %8 : vector<8x8xf32> to vector<8x8xbf16>
    %cst_11 = arith.constant dense<0.000000e+00> : vector<8x8xf32>
    %13 = tpu.matmul %11, %12, %cst_11 {dimension_numbers = #tpu.dot_dimension_numbers<[1], [1], [0], [0], [0, 0, 1, 0], [], []>} : vector<8x8xbf16>, vector<8x8xbf16>, vector<8x8xf32> -> vector<8x8xf32>
    %14 = tpu.iota {dimensions = array<i32: 0>} : vector<8x8xi32>
    %15 = tpu.iota {dimensions = array<i32: 1>} : vector<8x8xi32>
    %16 = arith.cmpi sle, %15, %14 : vector<8x8xi32>
    %cst_12 = arith.constant 1.000000e+30 : f32
    %17 = vector.broadcast %cst_12 : f32 to vector<8x8xf32>
    %18 = arith.subf %13, %17 : vector<8x8xf32>
    %19 = arith.select %16, %13, %18 : vector<8x8xi1>, vector<8x8xf32>
    %cst_13 = arith.constant dense<0xFF800000> : vector<8xf32>
    %20 = vector.multi_reduction <maximumf>, %19, %cst_13 [1] : vector<8x8xf32> to vector<8xf32>
    %21 = vector.shape_cast %20 : vector<8xf32> to vector<8x1xf32>
    %22 = vector.broadcast %21 : vector<8x1xf32> to vector<8x8xf32>
    %23 = arith.subf %19, %22 : vector<8x8xf32>
    %24 = math.exp %23 : vector<8x8xf32>
    %cst_14 = arith.constant dense<0.000000e+00> : vector<8xf32>
    %25 = vector.multi_reduction <add>, %24, %cst_14 [1] : vector<8x8xf32> to vector<8xf32>
    %26 = vector.shape_cast %25 : vector<8xf32> to vector<8x1xf32>
    %27 = arith.truncf %24 : vector<8x8xf32> to vector<8x8xbf16>
    %28 = arith.truncf %10 : vector<8x8xf32> to vector<8x8xbf16>
    %cst_15 = arith.constant dense<0.000000e+00> : vector<8x8xf32>
    %29 = tpu.matmul %27, %28, %cst_15 {dimension_numbers = #tpu.dot_dimension_numbers<[1], [0], [0], [1], [0, 0, 1, 1], [], []>} : vector<8x8xbf16>, vector<8x8xbf16>, vector<8x8xf32> -> vector<8x8xf32>
    %30 = tpu.reciprocal %26 {approx = true} : vector<8x1xf32> -> vector<8x1xf32>
    %31 = vector.broadcast %30 : vector<8x1xf32> to vector<8x8xf32>
    %32 = arith.mulf %29, %31 : vector<8x8xf32>
    %33 = arith.truncf %32 : vector<8x8xf32> to vector<8x8xbf16>
    %c0_16 = arith.constant 0 : index
    %c0_17 = arith.constant 0 : index
    %c0_18 = arith.constant 0 : index
    %34 = vector.load %arg6[%c0_16, %c0_17, %c0_18] : memref<1x32x8xbf16, #tpu.memory_space<vmem>>, vector<1x32x8xbf16>
    %35 = vector.shape_cast %34 : vector<1x32x8xbf16> to vector<32x8xbf16>
    %cst_19 = arith.constant dense<0.000000e+00> : vector<8x32xf32>
    %36 = tpu.matmul %33, %35, %cst_19 {dimension_numbers = #tpu.dot_dimension_numbers<[1], [1], [0], [0], [0, 0, 1, 0], [], []>} : vector<8x8xbf16>, vector<32x8xbf16>, vector<8x32xf32> -> vector<8x32xf32>
    %c0_i32 = arith.constant 0 : i32
    %37 = arith.cmpi eq, %arg1, %c0_i32 : i32
    %38 = arith.extui %37 : i1 to i32
    %c0_i32_20 = arith.constant 0 : i32
    %39 = arith.cmpi ne, %38, %c0_i32_20 : i32
    scf.if %39 {
      %c0_24 = arith.constant 0 : index
      %c0_25 = arith.constant 0 : index
      %46 = vector.load %arg8[%c0_24, %c0_25] : memref<8x32xf32, #tpu.memory_space<vmem>>, vector<8x32xf32>
      tpu.vector_store %arg8[%c0_24, %c0_25], %36 {strides = array<i32>} : memref<8x32xf32, #tpu.memory_space<vmem>>, vector<8x32xf32>,
    } else {
    }
    %c0_i32_21 = arith.constant 0 : i32
    %40 = arith.cmpi ne, %arg1, %c0_i32_21 : i32
    %41 = arith.extui %40 : i1 to i32
    %c0_i32_22 = arith.constant 0 : i32
    %42 = arith.cmpi ne, %41, %c0_i32_22 : i32
    scf.if %42 {
      %c0_24 = arith.constant 0 : index
      %c0_25 = arith.constant 0 : index
      %46 = vector.load %arg8[%c0_24, %c0_25] : memref<8x32xf32, #tpu.memory_space<vmem>>, vector<8x32xf32>
      %47 = arith.addf %46, %36 : vector<8x32xf32>
      %c0_26 = arith.constant 0 : index
      %c0_27 = arith.constant 0 : index
      %48 = vector.load %arg8[%c0_26, %c0_27] : memref<8x32xf32, #tpu.memory_space<vmem>>, vector<8x32xf32>
      tpu.vector_store %arg8[%c0_26, %c0_27], %47 {strides = array<i32>} : memref<8x32xf32, #tpu.memory_space<vmem>>, vector<8x32xf32>,
    } else {
    }
    %c3_i32 = arith.constant 3 : i32
    %43 = arith.cmpi eq, %arg1, %c3_i32 : i32
    %44 = arith.extui %43 : i1 to i32
    %c0_i32_23 = arith.constant 0 : i32
    %45 = arith.cmpi ne, %44, %c0_i32_23 : i32
    scf.if %45 {
      %c0_24 = arith.constant 0 : index
      %c0_25 = arith.constant 0 : index
      %46 = vector.load %arg8[%c0_24, %c0_25] : memref<8x32xf32, #tpu.memory_space<vmem>>, vector<8x32xf32>
      %c0_26 = arith.constant 0 : index
      %c0_27 = arith.constant 0 : index
      %c0_28 = arith.constant 0 : index
      %47 = vector.load %arg7[%c0_26, %c0_27, %c0_28] : memref<1x8x32xf32, #tpu.memory_space<vmem>>, vector<1x8x32xf32>
      %48 = vector.shape_cast %47 : vector<1x8x32xf32> to vector<8x32xf32>
      %49 = vector.shape_cast %46 : vector<8x32xf32> to vector<1x8x32xf32>
      tpu.vector_store %arg7[%c0_26, %c0_27, %c0_28], %49 {strides = array<i32>} : memref<1x8x32xf32, #tpu.memory_space<vmem>>, vector<1x8x32xf32>,
    } else {
    }
    return
  }
  func.func @transform_0(%arg0: i32, %arg1: i32) -> (i32, i32, i32) {
    %c0_i32 = arith.constant 0 : i32
    %c0_i32_0 = arith.constant 0 : i32
    %c0_i32_1 = arith.constant 0 : i32
    return %arg0, %c0_i32, %c0_i32_0 : i32, i32, i32
  }
  func.func @transform_1(%arg0: i32, %arg1: i32) -> (i32, i32) {
    %c0_i32 = arith.constant 0 : i32
    %c0_i32_0 = arith.constant 0 : i32
    return %arg1, %c0_i32 : i32, i32
  }
  func.func @transform_2(%arg0: i32, %arg1: i32) -> (i32, i32) {
    %c0_i32 = arith.constant 0 : i32
    %c0_i32_0 = arith.constant 0 : i32
    return %arg1, %c0_i32 : i32, i32
  }
  func.func @transform_3(%arg0: i32, %arg1: i32) -> (i32, i32) {
    %c0_i32 = arith.constant 0 : i32
    %c0_i32_0 = arith.constant 0 : i32
    return %arg1, %c0_i32 : i32, i32
  }
  func.func @transform_4(%arg0: i32, %arg1: i32) -> (i32, i32, i32) {
    %c0_i32 = arith.constant 0 : i32
    %c0_i32_0 = arith.constant 0 : i32
    %c0_i32_1 = arith.constant 0 : i32
    return %arg1, %c0_i32, %c0_i32_0 : i32, i32, i32
  }
  func.func @transform_5(%arg0: i32, %arg1: i32) -> (i32, i32, i32) {
    %c0_i32 = arith.constant 0 : i32
    %c0_i32_0 = arith.constant 0 : i32
    %c0_i32_1 = arith.constant 0 : i32
    return %arg0, %c0_i32, %c0_i32_0 : i32, i32, i32
  }
}

</mosaic_0001>

<llo_original>
// kernel: tpu_custom_call.1
$region0: #{tpu_custom_call.1}
  #allocation0 [shape = 'u32[]', space=smem, size = 0x4, offset = 0x4, fixed_abs, tag = 'smem constant byte address 0x4 - core index']
  #allocation1 [shape = 'u32[72,128]{1,0:T(1,128)}', space=vmem, size = 0x9000, scoped, tag = 'internal scratch']
  #allocation2 [shape = 'f32[8,32]{1,0:T(8,128)}', space=vmem, size = 0x1000, scoped, tag = 'scratch operand']
  %s0 = inlined_call_operand.vmem [shape: f32[2,8,32], index: 0, kind: input, shape index: {}]
  %s1 = inlined_call_operand.vmem [shape: bf16[32,32], index: 1, kind: input, shape index: {}]
  %s2 = inlined_call_operand.vmem [shape: bf16[32,32], index: 2, kind: input, shape index: {}]
  %s3 = inlined_call_operand.vmem [shape: bf16[32,32], index: 3, kind: input, shape index: {}]
  %s4 = inlined_call_operand.vmem [shape: bf16[4,32,8], index: 4, kind: input, shape index: {}]
  %s5 = inlined_call_operand.hbm [shape: f32[2,8,32], index: 5, kind: output, shape index: {}]
  %s6 = sld [smem:[#allocation0]]
  $region65: #{tpu_custom_call.1} parent=0
    _
  %s8 = ssub.s32 1, %s6
  %s9 = scalar_select 0, %s8, %s6
  $region1: #{tpu_custom_call.1} parent=0
    #allocation3 [shape = 'u8[8192]{0}', space=vmem, size = 0x2000, scoped, tag = 'output window, operand 0']
    #allocation4 [shape = 's32[2]{0}', space=sflag, size = 0x8, scoped, tag = 'scoped memory for tpu_custom_call.1']
    %10 = vsyncpa [#allocation4], 0
    %s11 = scalar_lea.sflag [#allocation4], 1
    %12 = vsyncpa %s11, 0
    loop: start=0, step=1, limit=10
    $region2: #{tpu_custom_call.1} parent=1 // loop_pre_header
      _
    $region3: #{tpu_custom_call.1} parent=1 // loop_header
      %s14 = sphi 0, %s18
      %p15 = scmp.ge.s32.totalorder %s14, 10
      %s21 = sphi 0, %s33
      %s22 = sphi 0, %s29
      %s23 = sphi 0, %s21
      %s24 = sphi 0, %s22
      %s25 = sphi 0, %s23
      %s26 = sphi 0, %s24
      %s36 = sphi 0, %s38
      %s39 = sphi 0, %s36
      %s40 = sphi 0, %s39
      %s56 = sphi 0, %s40
      %s62 = sphi 0, %s64
      %s65 = sphi 0, %s62
      %s66 = sphi 0, %s65
      %s82 = sphi 0, %s66
      %s88 = sphi 0, %s90
      %s91 = sphi 0, %s88
      %s92 = sphi 0, %s91
      %s108 = sphi 0, %s92
      %s114 = sphi 0, %s116
      %s117 = sphi 0, %s114
      %s118 = sphi 0, %s117
      %s134 = sphi 0, %s118
      %s140 = sphi 0, %s142
      %s143 = sphi 0, %s140
      %s144 = sphi 0, %s143
      %s160 = sphi 0, %s144
      %s166 = sphi 0, %s168
      %s169 = sphi 0, %s166
      %s170 = sphi 0, %s169
      %s186 = sphi 0, %s170
    $region4: #{tpu_custom_call.1} parent=1 // loop_header_branch
      %17 = sbr.rel (%p15) target = $region8
    $region5: #{tpu_custom_call.1} parent=1 // loop_body
      %s19 = ssub.s32 %s14, 1
      %s20 = ssub.s32 %s14, 2
      %s27 = sadd.s32 1, %s22
      %p28 = scmp.ge.s32.totalorder %s27, 4
      %s29 = scalar_select %p28, 0, %s27
      %s30 = sadd.s32 1, %s21
      %s31 = scalar_select %p28, %s30, %s21
      %p32 = scmp.ge.s32.totalorder %s31, 2
      %s33 = scalar_select %p32, 0, %s31
      %s34 = ssub.s32 %s21, %s33
      %p35 = scmp.eq.s32.totalorder %s34, 0
      %s37 = sadd.s32 %s36, 1
      %s38 = scalar_select %p35, %s36, %s37
      %p41 = pneg %p35
      %p42 = scmp.eq.s32.totalorder %s14, 7
      %p43 = por %p41, %p42
      %p44 = scmp.ne.s32.totalorder %s36, %s39
      %p45 = scmp.eq.s32.totalorder %s14, 0
      %p46 = por %p44, %p45
      %p47 = scmp.ne.s32.totalorder %s36, %s39
      %p48 = scmp.eq.s32.totalorder %s19, 7
      %p49 = por %p47, %p48
      %p50 = scmp.ne.s32.totalorder %s39, %s40
      %p51 = scmp.eq.s32.totalorder %s19, 0
      %p52 = por %p50, %p51
      %p53 = scmp.ne.s32.totalorder %s39, %s40
      %p54 = scmp.eq.s32.totalorder %s20, 7
      %p55 = por %p53, %p54
      %p57 = scmp.ne.s32.totalorder %s40, %s56
      %p58 = scmp.eq.s32.totalorder %s20, 0
      %p59 = por %p57, %p58
      %s60 = ssub.s32 %s22, %s29
      %p61 = scmp.eq.s32.totalorder %s60, 0
      %s63 = sadd.s32 %s62, 1
      %s64 = scalar_select %p61, %s62, %s63
      %p67 = pneg %p61
      %p68 = scmp.eq.s32.totalorder %s14, 7
      %p69 = por %p67, %p68
      %p70 = scmp.ne.s32.totalorder %s62, %s65
      %p71 = scmp.eq.s32.totalorder %s14, 0
      %p72 = por %p70, %p71
      %p73 = scmp.ne.s32.totalorder %s62, %s65
      %p74 = scmp.eq.s32.totalorder %s19, 7
      %p75 = por %p73, %p74
      %p76 = scmp.ne.s32.totalorder %s65, %s66
      %p77 = scmp.eq.s32.totalorder %s19, 0
      %p78 = por %p76, %p77
      %p79 = scmp.ne.s32.totalorder %s65, %s66
      %p80 = scmp.eq.s32.totalorder %s20, 7
      %p81 = por %p79, %p80
      %p83 = scmp.ne.s32.totalorder %s66, %s82
      %p84 = scmp.eq.s32.totalorder %s20, 0
      %p85 = por %p83, %p84
      %s86 = ssub.s32 %s22, %s29
      %p87 = scmp.eq.s32.totalorder %s86, 0
      %s89 = sadd.s32 %s88, 1
      %s90 = scalar_select %p87, %s88, %s89
      %p93 = pneg %p87
      %p94 = scmp.eq.s32.totalorder %s14, 7
      %p95 = por %p93, %p94
      %p96 = scmp.ne.s32.totalorder %s88, %s91
      %p97 = scmp.eq.s32.totalorder %s14, 0
      %p98 = por %p96, %p97
      %p99 = scmp.ne.s32.totalorder %s88, %s91
      %p100 = scmp.eq.s32.totalorder %s19, 7
      %p101 = por %p99, %p100
      %p102 = scmp.ne.s32.totalorder %s91, %s92
      %p103 = scmp.eq.s32.totalorder %s19, 0
      %p104 = por %p102, %p103
      %p105 = scmp.ne.s32.totalorder %s91, %s92
      %p106 = scmp.eq.s32.totalorder %s20, 7
      %p107 = por %p105, %p106
      %p109 = scmp.ne.s32.totalorder %s92, %s108
      %p110 = scmp.eq.s32.totalorder %s20, 0
      %p111 = por %p109, %p110
      %s112 = ssub.s32 %s22, %s29
      %p113 = scmp.eq.s32.totalorder %s112, 0
      %s115 = sadd.s32 %s114, 1
      %s116 = scalar_select %p113, %s114, %s115
      %p119 = pneg %p113
      %p120 = scmp.eq.s32.totalorder %s14, 7
      %p121 = por %p119, %p120
      %p122 = scmp.ne.s32.totalorder %s114, %s117
      %p123 = scmp.eq.s32.totalorder %s14, 0
      %p124 = por %p122, %p123
      %p125 = scmp.ne.s32.totalorder %s114, %s117
      %p126 = scmp.eq.s32.totalorder %s19, 7
      %p127 = por %p125, %p126
      %p128 = scmp.ne.s32.totalorder %s117, %s118
      %p129 = scmp.eq.s32.totalorder %s19, 0
      %p130 = por %p128, %p129
      %p131 = scmp.ne.s32.totalorder %s117, %s118
      %p132 = scmp.eq.s32.totalorder %s20, 7
      %p133 = por %p131, %p132
      %p135 = scmp.ne.s32.totalorder %s118, %s134
      %p136 = scmp.eq.s32.totalorder %s20, 0
      %p137 = por %p135, %p136
      %s138 = ssub.s32 %s22, %s29
      %p139 = scmp.eq.s32.totalorder %s138, 0
      %s141 = sadd.s32 %s140, 1
      %s142 = scalar_select %p139, %s140, %s141
      %p145 = pneg %p139
      %p146 = scmp.eq.s32.totalorder %s14, 7
      %p147 = por %p145, %p146
      %p148 = scmp.ne.s32.totalorder %s140, %s143
      %p149 = scmp.eq.s32.totalorder %s14, 0
      %p150 = por %p148, %p149
      %p151 = scmp.ne.s32.totalorder %s140, %s143
      %p152 = scmp.eq.s32.totalorder %s19, 7
      %p153 = por %p151, %p152
      %p154 = scmp.ne.s32.totalorder %s143, %s144
      %p155 = scmp.eq.s32.totalorder %s19, 0
      %p156 = por %p154, %p155
      %p157 = scmp.ne.s32.totalorder %s143, %s144
      %p158 = scmp.eq.s32.totalorder %s20, 7
      %p159 = por %p157, %p158
      %p161 = scmp.ne.s32.totalorder %s144, %s160
      %p162 = scmp.eq.s32.totalorder %s20, 0
      %p163 = por %p161, %p162
      %s164 = ssub.s32 %s21, %s33
      %p165 = scmp.eq.s32.totalorder %s164, 0
      %s167 = sadd.s32 %s166, 1
      %s168 = scalar_select %p165, %s166, %s167
      %p171 = pneg %p165
      %p172 = scmp.eq.s32.totalorder %s14, 7
      %p173 = por %p171, %p172
      %p174 = scmp.ne.s32.totalorder %s166, %s169
      %p175 = scmp.eq.s32.totalorder %s14, 0
      %p176 = por %p174, %p175
      %p177 = scmp.ne.s32.totalorder %s166, %s169
      %p178 = scmp.eq.s32.totalorder %s19, 7
      %p179 = por %p177, %p178
      %p180 = scmp.ne.s32.totalorder %s169, %s170
      %p181 = scmp.eq.s32.totalorder %s19, 0
      %p182 = por %p180, %p181
      %p183 = scmp.ne.s32.totalorder %s169, %s170
      %p184 = scmp.eq.s32.totalorder %s20, 7
      %p185 = por %p183, %p184
      %p187 = scmp.ne.s32.totalorder %s170, %s186
      %p188 = scmp.eq.s32.totalorder %s20, 0
      %p189 = por %p187, %p188
      %p190 = scmp.le.s32.totalorder 1, %s14
      %p191 = scmp.lt.s32.totalorder %s14, 9
      %p192 = pnand %p190, %p191
      %p193 = pneg %p192
      // Predicated region
      $region9: #{tpu_custom_call.1} parent=5 // pred_check
        _
      $region10: #{tpu_custom_call.1} parent=5 // pred_check_branch
        %195 = sbr.rel (%p192) target = $region12
      $region11: #{tpu_custom_call.1} parent=5 // pred_region
        %s196 = ssub.s32 %s14, 1
      $region12: #{tpu_custom_call.1} parent=5 // pred_fallthru
        _
      %p197 = scmp.lt.s32.totalorder %s14, 8
      // Predicated region
      $region13: #{tpu_custom_call.1} parent=5 // pred_check
        %p198 = pneg %p197
      $region14: #{tpu_custom_call.1} parent=5 // pred_check_branch
        %200 = sbr.rel (%p198) target = $region16
      $region15: #{tpu_custom_call.1} parent=5 // pred_region
        // Predicated region
        $region17: #{tpu_custom_call.1} parent=15 // pred_check
          %p201 = pneg %p46
        $region18: #{tpu_custom_call.1} parent=15 // pred_check_branch
          %203 = sbr.rel (%p201) target = $region20
        $region19: #{tpu_custom_call.1} parent=15 // pred_region
          %p204 = scmp.lt.s32.totalorder %s21, 1
          %s205 = scalar_select %p204, %s21, 1
          %s206 = smul.addr %s205, 8
          %s207 = scalar_lea.vmem %s0, %s206
        $region20: #{tpu_custom_call.1} parent=15 // pred_fallthru
          _
        // Predicated region
        $region21: #{tpu_custom_call.1} parent=15 // pred_check
          %p208 = pneg %p72
        $region22: #{tpu_custom_call.1} parent=15 // pred_check_branch
          %210 = sbr.rel (%p208) target = $region24
        $region23: #{tpu_custom_call.1} parent=15 // pred_region
          %p211 = scmp.lt.s32.totalorder %s22, 3
          %s212 = scalar_select %p211, %s22, 3
          %s213 = smul.addr %s212, 4
          %s214 = scalar_lea.vmem %s1, %s213
        $region24: #{tpu_custom_call.1} parent=15 // pred_fallthru
          _
        // Predicated region
        $region25: #{tpu_custom_call.1} parent=15 // pred_check
          %p215 = pneg %p98
        $region26: #{tpu_custom_call.1} parent=15 // pred_check_branch
          %217 = sbr.rel (%p215) target = $region28
        $region27: #{tpu_custom_call.1} parent=15 // pred_region
          %p218 = scmp.lt.s32.totalorder %s22, 3
          %s219 = scalar_select %p218, %s22, 3
          %s220 = smul.addr %s219, 4
          %s221 = scalar_lea.vmem %s2, %s220
        $region28: #{tpu_custom_call.1} parent=15 // pred_fallthru
          _
        // Predicated region
        $region29: #{tpu_custom_call.1} parent=15 // pred_check
          %p222 = pneg %p124
        $region30: #{tpu_custom_call.1} parent=15 // pred_check_branch
          %224 = sbr.rel (%p222) target = $region32
        $region31: #{tpu_custom_call.1} parent=15 // pred_region
          %p225 = scmp.lt.s32.totalorder %s22, 3
          %s226 = scalar_select %p225, %s22, 3
          %s227 = smul.addr %s226, 4
          %s228 = scalar_lea.vmem %s3, %s227
        $region32: #{tpu_custom_call.1} parent=15 // pred_fallthru
          _
        // Predicated region
        $region33: #{tpu_custom_call.1} parent=15 // pred_check
          %p229 = pneg %p150
        $region34: #{tpu_custom_call.1} parent=15 // pred_check_branch
          %231 = sbr.rel (%p229) target = $region36
        $region35: #{tpu_custom_call.1} parent=15 // pred_region
          %p232 = scmp.lt.s32.totalorder %s22, 3
          %s233 = scalar_select %p232, %s22, 3
          %s234 = smul.addr %s233, 4
          %s235 = smul.addr %s234, 4
          %s236 = scalar_lea.vmem %s4, %s235
        $region36: #{tpu_custom_call.1} parent=15 // pred_fallthru
          _
      $region16: #{tpu_custom_call.1} parent=5 // pred_fallthru
        _
      %p237 = scmp.le.s32.totalorder 1, %s14
      %p238 = scmp.lt.s32.totalorder %s14, 9
      %p239 = pnand %p237, %p238
      %p240 = pneg %p239
      // Predicated region
      $region37: #{tpu_custom_call.1} parent=5 // pred_check
        _
      $region38: #{tpu_custom_call.1} parent=5 // pred_check_branch
        %242 = sbr.rel (%p239) target = $region40
      $region39: #{tpu_custom_call.1} parent=5 // pred_region
        %s243 = ssub.s32 %s14, 1
        %p244 = scmp.lt.s32.totalorder %s23, 1
        %s245 = scalar_select %p244, %s23, 1
        %s246 = smul.addr %s245, 8
        %s247 = scalar_lea.vmem %s0, %s246
        %p248 = pneg %p52
        %p249 = pneg %p49
        %p250 = scmp.lt.s32.totalorder %s24, 3
        %s251 = scalar_select %p250, %s24, 3
        %s252 = smul.addr %s251, 4
        %s253 = scalar_lea.vmem %s1, %s252
        %p254 = pneg %p78
        %p255 = pneg %p75
        %p256 = scmp.lt.s32.totalorder %s24, 3
        %s257 = scalar_select %p256, %s24, 3
        %s258 = smul.addr %s257, 4
        %s259 = scalar_lea.vmem %s2, %s258
        %p260 = pneg %p104
        %p261 = pneg %p101
        %p262 = scmp.lt.s32.totalorder %s24, 3
        %s263 = scalar_select %p262, %s24, 3
        %s264 = smul.addr %s263, 4
        %s265 = scalar_lea.vmem %s3, %s264
        %p266 = pneg %p130
        %p267 = pneg %p127
        %p268 = scmp.lt.s32.totalorder %s24, 3
        %s269 = scalar_select %p268, %s24, 3
        %s270 = smul.addr %s269, 4
        %s271 = smul.addr %s270, 4
        %s272 = scalar_lea.vmem %s4, %s271
        %p273 = pneg %p156
        %p274 = pneg %p153
        %p275 = pneg %p182
        %p276 = pneg %p179
        %s277 = sand.u32 %s169, 1
        %s278 = scalar_lea.sflag [#allocation4], %s277
        %s279 = sand.u32 %s169, 1
        %s280 = smul.addr %s279, 8
        %s281 = scalar_lea.vmem [#allocation3], %s280
        %p282 = scmp.lt.s32.totalorder %s23, 1
        %s283 = scalar_select %p282, %s23, 1
        %s284 = smul.addr %s283, 8
        %s285 = scalar_lea.vmem %s0, %s284
        %p286 = scmp.lt.s32.totalorder %s24, 3
        %s287 = scalar_select %p286, %s24, 3
        %s288 = smul.addr %s287, 4
        %s289 = scalar_lea.vmem %s1, %s288
        %p290 = scmp.lt.s32.totalorder %s24, 3
        %s291 = scalar_select %p290, %s24, 3
        %s292 = smul.addr %s291, 4
        %s293 = scalar_lea.vmem %s2, %s292
        %p294 = scmp.lt.s32.totalorder %s24, 3
        %s295 = scalar_select %p294, %s24, 3
        %s296 = smul.addr %s295, 4
        %s297 = scalar_lea.vmem %s3, %s296
        %p298 = scmp.lt.s32.totalorder %s24, 3
        %s299 = scalar_select %p298, %s24, 3
        %s300 = smul.addr %s299, 4
        %s301 = smul.addr %s300, 4
        %s302 = scalar_lea.vmem %s4, %s301
        %v304 = vld [vmem:[%s285] sm:$0xff]
        %v305 = vpack.c.bf16 %v304, %v304
        %v306 = vld [vmem:[%s289] sm:$0xf]
        %vm307 = vcmask 261120
        %v309 = vsel %vm307, %v305, 0
        %v312 = vsel %vm307, %v306, 0
        %314 = vmatpush.bf16.xpose.msra.mxu0 0
        %315 = vmatpush.bf16.xpose.msra.mxu0 0
        %316 = vmatpush.bf16.xpose.msra.mxu0 0
        %317 = vmatpush.bf16.xpose.msra.mxu0 0
        %318 = vmatpush.bf16.xpose.msra.mxu0 0
        %319 = vmatpush.bf16.xpose.msra.mxu0 0
        %320 = vmatpush.bf16.xpose.msra.mxu0 0
        %321 = vmatpush.bf16.xpose.msra.mxu0 %v312
        %322 = vmatmul.bf16.gmra.mxu0 %v309
        %v323 = vpop.f32.mrf.mxu0
        %v324 = vadd.f32 0.0, %v323
        %v325 = vpop.f32.mrf.mxu0
        %326 = vdwg.mxu0
        %v327 = vmul.f32 %v324, 0.17677669
        %v328 = vld [vmem:[%s293] sm:$0xf]
        %v330 = vsel %vm307, %v328, 0
        %332 = vmatpush.bf16.xpose.msra.mxu0 0
        %333 = vmatpush.bf16.xpose.msra.mxu0 0
        %334 = vmatpush.bf16.xpose.msra.mxu0 0
        %335 = vmatpush.bf16.xpose.msra.mxu0 0
        %336 = vmatpush.bf16.xpose.msra.mxu0 0
        %337 = vmatpush.bf16.xpose.msra.mxu0 0
        %338 = vmatpush.bf16.xpose.msra.mxu0 0
        %339 = vmatpush.bf16.xpose.msra.mxu0 %v330
        %340 = vmatmul.bf16.gmra.mxu0 %v309
        %v341 = vpop.f32.mrf.mxu0
        %v342 = vadd.f32 0.0, %v341
        %v343 = vpop.f32.mrf.mxu0
        %344 = vdwg.mxu0
        %v345 = vld [vmem:[%s297] sm:$0xf]
        %v347 = vsel %vm307, %v345, 0
        %349 = vmatpush.bf16.xpose.msra.mxu0 0
        %350 = vmatpush.bf16.xpose.msra.mxu0 0
        %351 = vmatpush.bf16.xpose.msra.mxu0 0
        %352 = vmatpush.bf16.xpose.msra.mxu0 0
        %353 = vmatpush.bf16.xpose.msra.mxu0 0
        %354 = vmatpush.bf16.xpose.msra.mxu0 0
        %355 = vmatpush.bf16.xpose.msra.mxu0 0
        %356 = vmatpush.bf16.xpose.msra.mxu0 %v347
        %357 = vmatmul.bf16.gmra.mxu0 %v309
        %v358 = vpop.f32.mrf.mxu0
        %v359 = vadd.f32 0.0, %v358
        %v360 = vpop.f32.mrf.mxu0
        %361 = vdwg.mxu0
        %v362 = vpack.c.bf16 %v327, %v327
        %v363 = vpack.c.bf16 %v342, %v342
        %vm364 = vcmask 64512
        %v366 = vsel %vm364, %v362, 0
        %v369 = vsel %vm364, %v363, 0
        %371 = vmatpush.bf16.xpose.msra.mxu0 0
        %372 = vmatpush.bf16.xpose.msra.mxu0 0
        %373 = vmatpush.bf16.xpose.msra.mxu0 0
        %374 = vmatpush.bf16.xpose.msra.mxu0 0
        %375 = vmatpush.bf16.xpose.msra.mxu0 0
        %376 = vmatpush.bf16.xpose.msra.mxu0 0
        %377 = vmatpush.bf16.xpose.msra.mxu0 0
        %378 = vmatpush.bf16.xpose.msra.mxu0 %v369
        %379 = vmatmul.bf16.gmra.mxu0 %v366
        %v380 = vpop.f32.mrf.mxu0
        %v381 = vadd.f32 0.0, %v380
        %v382 = vpop.f32.mrf.mxu0
        %383 = vdwg.mxu0
        %v384 = vlaneseq
        %v385 = vshrl.u32 %v384, 7
        %v386 = vlaneseq
        %v387 = vand.u32 %v386, 127
        %vm388 = vcmp.le.s32.totalorder %v387, %v385
        %v389 = vsub.f32 %v381, 1e+30
        %v390 = vsel %vm388, %v381, %v389
        %v391 = vsel %vm364, %v390, -inf
        %392 = vmax.xlane.f32.xlu0 %v391
        %v393 = vpop.xlane.xlu0 %392
        %v394 = vsub.f32 %v390, %v393
        %v395 = vmul.f32 %v394, 1.442695
        %v396 = vpow.pop %v395
        %v397 = vsel %vm364, %v396, 0.0
        %398 = vadd.xlane.f32.xlu0 %v397
        %v399 = vpop.xlane.xlu0 %398
        %v400 = vpack.c.bf16 %v396, %v396
        %v401 = vpack.c.bf16 %v359, %v359
        %v403 = vsel %vm364, %v400, 0
        %vm405 = vcmask 1043456
        %v407 = vsel %vm405, %v401, 0
        %409 = vmatpush.bf16.msra.mxu0 0
        %410 = vmatpush.bf16.msra.mxu0 0
        %411 = vmatpush.bf16.msra.mxu0 0
        %412 = vmatpush.bf16.msra.mxu0 0
        %413 = vmatpush.bf16.msra.mxu0 0
        %414 = vmatpush.bf16.msra.mxu0 0
        %415 = vmatpush.bf16.msra.mxu0 0
        %416 = vmatpush.bf16.msra.mxu0 %v407
        %417 = vmatmul.bf16.gmra.mxu0 %v403
        %v418 = vpop.f32.mrf.mxu0
        %v419 = vadd.f32 0.0, %v418
        %v420 = vpop.f32.mrf.mxu0
        %421 = vdwg.mxu0
        %v422 = vrcp.pop %v399
        %v423 = vmul.f32 %v419, %v422
        %v424 = vpack.c.bf16 %v423, %v423
        %v425 = vld [vmem:[%s302] sm:$0xf]
        %v426 = vld [vmem:[%s302 + $0x4] sm:$0xf]
        %v427 = vld [vmem:[%s302 + $0x8] sm:$0xf]
        %v428 = vld [vmem:[%s302 + $0xc] sm:$0xf]
        %v433 = vunpack.c.l.b16 %v425
        %v434 = vunpack.c.l.b16 %v426
        %v435 = vunpack.c.l.b16 %v427
        %v436 = vunpack.c.l.b16 %v428
        %v437 = vpack.c.b16 %v434, %v433
        %v438 = vpack.c.b16 %v436, %v435
        %v440 = vsel %vm364, %v424, 0
        %v443 = vsel %vm364, %v437, 0
        %v446 = vsel %vm364, %v438, 0
        %448 = vmatpush.bf16.xpose.msra.mxu0 0
        %449 = vmatpush.bf16.xpose.msra.mxu0 0
        %450 = vmatpush.bf16.xpose.msra.mxu0 0
        %451 = vmatpush.bf16.xpose.msra.mxu0 0
        %452 = vmatpush.bf16.xpose.msra.mxu0 0
        %453 = vmatpush.bf16.xpose.msra.mxu0 0
        %454 = vmatpush.bf16.xpose.msra.mxu0 %v446
        %455 = vmatpush.bf16.xpose.msra.mxu0 %v443
        %456 = vmatmul.bf16.gmra.mxu0 %v440
        %v457 = vpop.f32.mrf.mxu0
        %v458 = vadd.f32 0.0, %v457
        %v459 = vpop.f32.mrf.mxu0
        %460 = vdwg.mxu0
        %p461 = scmp.eq.s32.totalorder %s24, 0
        // Predicated region
        $region41: #{tpu_custom_call.1} parent=39 // pred_check
          %p462 = pneg %p461
        $region42: #{tpu_custom_call.1} parent=39 // pred_check_branch
          %464 = sbr.rel (%p462) target = $region44
        $region43: #{tpu_custom_call.1} parent=39 // pred_region
          %465 = vst.msk [vmem:[#allocation2] sm:$0xff] %vm307, %v458
        $region44: #{tpu_custom_call.1} parent=39 // pred_fallthru
          _
        %p466 = scmp.ne.s32.totalorder %s24, 0
        // Predicated region
        $region45: #{tpu_custom_call.1} parent=39 // pred_check
          %p467 = pneg %p466
        $region46: #{tpu_custom_call.1} parent=39 // pred_check_branch
          %469 = sbr.rel (%p467) target = $region48
        $region47: #{tpu_custom_call.1} parent=39 // pred_region
          %v470 = vld [vmem:[#allocation2] sm:$0xff]
          %v471 = vadd.f32 %v470, %v458
          %472 = vst.msk [vmem:[#allocation2] sm:$0xff] %vm307, %v471
        $region48: #{tpu_custom_call.1} parent=39 // pred_fallthru
          _
        %p473 = scmp.eq.s32.totalorder %s24, 3
        // Predicated region
        $region49: #{tpu_custom_call.1} parent=39 // pred_check
          %p474 = pneg %p473
        $region50: #{tpu_custom_call.1} parent=39 // pred_check_branch
          %476 = sbr.rel (%p474) target = $region52
        $region51: #{tpu_custom_call.1} parent=39 // pred_region
          %v477 = vld [vmem:[#allocation2] sm:$0xff]
          %478 = vst.msk [vmem:[%s281] sm:$0xff] %vm307, %v477
        $region52: #{tpu_custom_call.1} parent=39 // pred_fallthru
          _
        %s479 = sand.u32 %s169, 1
        %s480 = scalar_lea.sflag [#allocation4], %s479
        %s481 = sand.u32 %s169, 1
        %s482 = smul.addr %s481, 8
        %s483 = scalar_lea.vmem [#allocation3], %s482
        // Predicated region
        $region53: #{tpu_custom_call.1} parent=39 // pred_check
          %p484 = pneg %p179
        $region54: #{tpu_custom_call.1} parent=39 // pred_check_branch
          %486 = sbr.rel (%p484) target = $region56
        $region55: #{tpu_custom_call.1} parent=39 // pred_region
          %488 = vsyncadd %s480, 0
          %s489 = smul.addr %s23, 8
          %s490 = scalar_lea.hbm %s5, %s489
          %s492 = sshll.u32 %s483, 4
          %s493 = int_to_ptr.vmem [resolvable:$true] %s492
          %s494 = sshll.u32 %s490, 4
          %s495 = int_to_ptr.hbm [resolvable:$true] %s494
          %497 = dma.vmem_to_hbm [thread:$0]  %s493, 128, %s495, %s480
        $region56: #{tpu_custom_call.1} parent=39 // pred_fallthru
          _
      $region40: #{tpu_custom_call.1} parent=5 // pred_fallthru
        _
      %p498 = scmp.le.s32.totalorder 2, %s14
      // Predicated region
      $region57: #{tpu_custom_call.1} parent=5 // pred_check
        %p499 = pneg %p498
      $region58: #{tpu_custom_call.1} parent=5 // pred_check_branch
        %501 = sbr.rel (%p499) target = $region60
      $region59: #{tpu_custom_call.1} parent=5 // pred_region
        %s502 = ssub.s32 %s14, 2
        // Predicated region
        $region61: #{tpu_custom_call.1} parent=59 // pred_check
          %p503 = pneg %p185
        $region62: #{tpu_custom_call.1} parent=59 // pred_check_branch
          %505 = sbr.rel (%p503) target = $region64
        $region63: #{tpu_custom_call.1} parent=59 // pred_region
          %s506 = sand.u32 %s170, 1
          %s507 = scalar_lea.sflag [#allocation4], %s506
          %s508 = sand.u32 %s170, 1
          %s509 = smul.addr %s508, 8
          %s510 = scalar_lea.vmem [#allocation3], %s509
          %512 = dma.done %s507, 128
        $region64: #{tpu_custom_call.1} parent=59 // pred_fallthru
          _
      $region60: #{tpu_custom_call.1} parent=5 // pred_fallthru
        _
    $region6: #{tpu_custom_call.1} parent=1 // loop_footer
      %s18 = sadd.s32 1, %s14
    $region7: #{tpu_custom_call.1} parent=1 // loop_footer_branch
      %13 = sbr.rel target = $region3
    $region8: #{tpu_custom_call.1} parent=1 // loop_exit
      _
    %513 = vsyncpa [#allocation4], 1
    %s514 = scalar_lea.sflag [#allocation4], 1
    %515 = vsyncpa %s514, 1

</llo_original>
